<compile_context>
chip_gen: v5e
topology: v5e:2x2
jax: 0.10.0
libtpu: 0.0.40
codegen_flags: <defaults>
</compile_context>

<pallas_src>
import functools

import jax
import jax.numpy as jnp
from jax import lax
from jax.experimental import pallas as pl
from jax.experimental.pallas import tpu as pltpu

_MIB = 1024 * 1024
_LANE_TARGET = 2048          # target lane-dim tile (multiple of 128)


def _detect_vmem_limit():
    """Generation-aware scoped-VMEM limit (v5e/v6e: 64 MiB, v7x: ~40 MiB)."""
    phys = 64 * _MIB                                  # conservative fallback (v7x-sized)
    try:
        info = pltpu.get_tpu_info()
        phys = int(getattr(info, "vmem_capacity_bytes", phys)) or phys
    except Exception:
        pass
    return int(min(64 * _MIB, max(32 * _MIB, (phys * 5) // 8)))


_VMEM_LIMIT = _detect_vmem_limit()
# Input is the only large pipelined operand (2 buffers); 2*block + output +
# scratch stays comfortably under the scoped limit on every generation.
_BLOCK_BYTES = int(min(8 * _MIB, _VMEM_LIMIT // 4))

_COMPILER_PARAMS = pltpu.CompilerParams(
    dimension_semantics=("parallel", "parallel", "arbitrary"),
    vmem_limit_bytes=_VMEM_LIMIT,
)


# ------------------------------ tile helpers ---------------------------------
def _round_down(value, multiple):
    return max(multiple, (value // multiple) * multiple)


def _lane_tile(size, target):
    # Lane-mapped axis: full axis when it fits, else a bounded 128-multiple.
    # Ragged trailing blocks are legal; OOB lanes are clipped / masked.
    if size <= target or size <= 128:
        return size
    return _round_down(min(size, target), 128)


def _sublane_tile(size, target):
    if size <= target or size <= 8:
        return size
    return _round_down(min(size, target), 8)


def _halve_lane_tile(size, tile):
    # Give a lane-mapped parallel axis >=2 blocks (v7x has 2 TensorCores).
    if tile < size or size < 256:
        return tile
    half = ((size + 1) // 2 + 127) // 128 * 128
    return half if half < size else tile


def _halve_sublane_tile(size, tile):
    if tile < size or size < 16:
        return tile
    half = ((size + 1) // 2 + 7) // 8 * 8
    return half if half < size else tile


def _acc_dtype(dtype):
    # fp32 accumulation for sub-32-bit floats (matches torch's accumulate).
    if jnp.issubdtype(dtype, jnp.floating) and jnp.dtype(dtype).itemsize <= 4:
        return jnp.float32
    return dtype


# --------------------------- dim = 1 (middle axis) ---------------------------
def _sum_dim1_kernel(x_ref, o_ref, acc_ref, *, d1, tk, acc_dtype):
    k = pl.program_id(2)

    @pl.when(k == 0)
    def _():
        acc_ref[...] = jnp.zeros_like(acc_ref)

    x = x_ref[...].astype(acc_dtype)                   # (tb, tk, td2)
    if d1 % tk != 0:                                    # mask ragged reduction tail
        rows = lax.broadcasted_iota(jnp.int32, x.shape, dimension=1)
        x = jnp.where(rows + k * tk < d1, x, jnp.zeros((), x.dtype))
    acc_ref[...] += jnp.sum(x, axis=1)                  # (tb, td2)

    @pl.when(k == pl.num_programs(2) - 1)
    def _():
        o_ref[...] = acc_ref[...].astype(o_ref.dtype)   # lane-dense store


@functools.partial(jax.jit, static_argnames=("tk", "td2"))
def _sum_dim1(x, tk=None, td2=None):
    B, D1, D2 = x.shape
    itemsize = jnp.dtype(x.dtype).itemsize
    acc = _acc_dtype(x.dtype)
    tb = min(B, 8)
    if td2 is None:
        td2 = _lane_tile(D2, _LANE_TARGET)
        if tb >= B and td2 >= D2:                       # both parallel axes single-block
            td2 = _halve_lane_tile(D2, td2)
    if tk is None:
        rows_budget = max(8, _BLOCK_BYTES // (tb * td2 * itemsize))
        tk = _sublane_tile(D1, rows_budget)
    grid = (pl.cdiv(B, tb), pl.cdiv(D2, td2), pl.cdiv(D1, tk))
    out2d = pl.pallas_call(
        functools.partial(_sum_dim1_kernel, d1=D1, tk=tk, acc_dtype=acc),
        out_shape=jax.ShapeDtypeStruct((B, D2), x.dtype),
        grid_spec=pltpu.PrefetchScalarGridSpec(
            num_scalar_prefetch=0,
            grid=grid,
            in_specs=[pl.BlockSpec((tb, tk, td2), lambda b, j, k: (b, k, j))],
            out_specs=pl.BlockSpec((tb, td2), lambda b, j, k: (b, j)),
            scratch_shapes=[pltpu.VMEM((tb, td2), acc)],
        ),
        compiler_params=_COMPILER_PARAMS,
    )(x)
    return out2d.reshape(B, 1, D2)


# --------------------------- dim = 2 (last axis) -----------------------------
def _sum_dim2_kernel(x_ref, o_ref, acc_ref, *, d2, t2, fold, acc_dtype):
    k = pl.program_id(2)

    @pl.when(k == 0)
    def _():
        acc_ref[...] = jnp.zeros_like(acc_ref)

    x = x_ref[...].astype(acc_dtype)                    # (tb, t1, t2)
    if d2 % t2 != 0:                                    # mask ragged reduction tail
        cols = lax.broadcasted_iota(jnp.int32, x.shape, dimension=2)
        x = jnp.where(cols + k * t2 < d2, x, jnp.zeros((), x.dtype))
    if fold:
        # VALU-only fold of 128-wide lane chunks; the XLU cross-lane reduce is
        # deferred to the final step (once per output block).
        part = x[:, :, 0:128]
        for c in range(1, t2 // 128):
            part = part + x[:, :, c * 128:(c + 1) * 128]
        acc_ref[...] += part                            # (tb, t1, 128)
    else:
        acc_ref[...] += jnp.sum(x, axis=2)              # (tb, t1)

    @pl.when(k == pl.num_programs(2) - 1)
    def _():
        res = jnp.sum(acc_ref[...], axis=2) if fold else acc_ref[...]
        o_ref[...] = res.astype(o_ref.dtype)            # lane-dense store


@functools.partial(jax.jit, static_argnames=("t1", "t2"))
def _sum_dim2(x, t1=None, t2=None):
    B, D1, D2 = x.shape
    itemsize = jnp.dtype(x.dtype).itemsize
    acc = _acc_dtype(x.dtype)
    tb = min(B, 8)
    if t2 is None:
        t2 = _lane_tile(D2, _LANE_TARGET)               # big reduce/lane tile first
    if t1 is None:
        t1_budget = max(128, _BLOCK_BYTES // (tb * t2 * itemsize))
        t1 = _lane_tile(D1, t1_budget)                  # output lane dim: 128-mult or full
        if tb >= B and t1 >= D1:                        # both parallel axes single-block
            t1 = _halve_lane_tile(D1, t1)
    fold = (t2 % 128 == 0)
    acc_shape = (tb, t1, 128) if fold else (tb, t1)
    grid = (pl.cdiv(B, tb), pl.cdiv(D1, t1), pl.cdiv(D2, t2))
    out2d = pl.pallas_call(
        functools.partial(_sum_dim2_kernel, d2=D2, t2=t2, fold=fold, acc_dtype=acc),
        out_shape=jax.ShapeDtypeStruct((B, D1), x.dtype),
        grid_spec=pltpu.PrefetchScalarGridSpec(
            num_scalar_prefetch=0,
            grid=grid,
            in_specs=[pl.BlockSpec((tb, t1, t2), lambda b, i, k: (b, i, k))],
            out_specs=pl.BlockSpec((tb, t1), lambda b, i, k: (b, i)),
            scratch_shapes=[pltpu.VMEM(acc_shape, acc)],
        ),
        compiler_params=_COMPILER_PARAMS,
    )(x)
    return out2d.reshape(B, D1, 1)


# --------------------------- dim = 0 (batch axis) ----------------------------
def _sum_dim0_kernel(x_ref, o_ref, acc_ref, *, b, tb, acc_dtype):
    k = pl.program_id(2)

    @pl.when(k == 0)
    def _():
        acc_ref[...] = jnp.zeros_like(acc_ref)

    x = x_ref[...].astype(acc_dtype)                    # (tb, t1, t2)
    if b % tb != 0:                                     # mask ragged reduction tail
        rows = lax.broadcasted_iota(jnp.int32, x.shape, dimension=0)
        x = jnp.where(rows + k * tb < b, x, jnp.zeros((), x.dtype))
    acc_ref[...] += jnp.sum(x, axis=0)                  # (t1, t2) pure-VALU folds

    @pl.when(k == pl.num_programs(2) - 1)
    def _():
        o_ref[...] = acc_ref[...].astype(o_ref.dtype)   # dense store


@functools.partial(jax.jit, static_argnames=("tb",))
def _sum_dim0(x, tb=None):
    B, D1, D2 = x.shape
    itemsize = jnp.dtype(x.dtype).itemsize
    acc = _acc_dtype(x.dtype)
    if tb is None:
        tb = min(B, 8)
    t2 = _lane_tile(D2, _LANE_TARGET)
    # max(tb, 4) keeps (t1, t2)-sized output block + f32 scratch well under VMEM.
    rows_budget = max(8, _BLOCK_BYTES // (max(tb, 4) * t2 * itemsize))
    t1 = _sublane_tile(D1, rows_budget)
    if t1 >= D1 and t2 >= D2:                           # both parallel axes single-block
        t2_split = _halve_lane_tile(D2, t2)
        if t2_split < t2:
            t2 = t2_split
        else:
            t1 = _halve_sublane_tile(D1, t1)
    grid = (pl.cdiv(D1, t1), pl.cdiv(D2, t2), pl.cdiv(B, tb))
    out2d = pl.pallas_call(
        functools.partial(_sum_dim0_kernel, b=B, tb=tb, acc_dtype=acc),
        out_shape=jax.ShapeDtypeStruct((D1, D2), x.dtype),
        grid_spec=pltpu.PrefetchScalarGridSpec(
            num_scalar_prefetch=0,
            grid=grid,
            in_specs=[pl.BlockSpec((tb, t1, t2), lambda i, j, k: (k, i, j))],
            out_specs=pl.BlockSpec((t1, t2), lambda i, j, k: (i, j)),
            scratch_shapes=[pltpu.VMEM((t1, t2), acc)],
        ),
        compiler_params=_COMPILER_PARAMS,
    )(x)
    return out2d.reshape(1, D1, D2)


# ------------------------------- public API ----------------------------------
def sum_reduction(x, dim: int):
    """Pallas equivalent of sum_reduction_cuda(x, dim): sum over `dim`, keepdim=True."""
    assert x.ndim == 3, "module expects a 3-D input [batch, dim1, dim2]"
    if dim < 0:
        dim += 3
    if dim == 0:
        return _sum_dim0(x)
    elif dim == 1:
        return _sum_dim1(x)
    elif dim == 2:
        return _sum_dim2(x)
    raise ValueError(f"unsupported reduce dim {dim}")


class ModelNew:
    """JAX/Pallas port of the PyTorch ModelNew (custom sum reduction, keepdim=True)."""

    def __init__(self, dim: int):
        self.dim = dim

    def __call__(self, x):
        return sum_reduction(x, self.dim)


if __name__ == "__main__":
    key = jax.random.PRNGKey(0)
    ok = True

    def check(out, ref, atol=1e-4, rtol=1e-5):
        out = jax.block_until_ready(out)
        return out.shape == ref.shape and bool(
            jnp.allclose(out, ref, atol=atol, rtol=rtol)
        )

    # Primary small shape, all three reduce dims.
    x = jax.random.normal(key, (2, 16, 128), dtype=jnp.float32)
    for dim in (0, 1, 2):
        ok &= check(ModelNew(dim)(x), jnp.sum(x, axis=dim, keepdims=True))

    # Exercise the masked ragged-tail paths with forced small reduction tiles.
    k0, k1, k2, k3 = jax.random.split(key, 4)
    x1 = jax.random.normal(k1, (2, 20, 128), dtype=jnp.float32)
    ok &= check(_sum_dim1(x1, tk=8), jnp.sum(x1, axis=1, keepdims=True))

    x2 = jax.random.normal(k2, (2, 16, 384), dtype=jnp.float32)
    ok &= check(_sum_dim2(x2, t2=256), jnp.sum(x2, axis=2, keepdims=True))

    x0 = jax.random.normal(k0, (5, 16, 128), dtype=jnp.float32)
    ok &= check(_sum_dim0(x0, tb=2), jnp.sum(x0, axis=0, keepdims=True))

    # Non-multiple-of-128 last dim (non-fold path).
    x3 = jax.random.normal(k3, (2, 16, 100), dtype=jnp.float32)
    ok &= check(ModelNew(2)(x3), jnp.sum(x3, axis=2, keepdims=True))

    # bf16 input: f32-accumulated, cast only at the final step.
    xb = jax.random.normal(key, (2, 16, 128), dtype=jnp.bfloat16)
    ref_b = jnp.sum(xb.astype(jnp.float32), axis=1, keepdims=True).astype(jnp.bfloat16)
    ok &= check(ModelNew(1)(xb), ref_b, atol=1e-1, rtol=1e-2)

    print("KERNEL_OK" if ok else "KERNEL_MISMATCH")
</pallas_src>

<mosaic_0001>
module attributes {stable_mosaic.version = 11 : i64} {
  func.func @_sum_dim0_kernel(%arg0: i32, %arg1: i32, %arg2: i32, %arg3: memref<2x8x128xf32, #tpu.memory_space<vmem>>, %arg4: memref<8x128xf32, #tpu.memory_space<vmem>>, %arg5: memref<8x128xf32, #tpu.memory_space<vmem>>) attributes {dimension_semantics = [#tpu.dimension_semantics<parallel>, #tpu.dimension_semantics<parallel>, #tpu.dimension_semantics<arbitrary>], iteration_bounds = array<i64: 2, 1, 1>, scalar_prefetch = 0 : i64, scratch_operands = 1 : i64, tpu.core_type = #tpu.core_type<tc>, window_params = [{transform_indices = @transform_0, window_bounds = array<i64: 2, 8, 128>}, {transform_indices = @transform_1, window_bounds = array<i64: 8, 128>}]} {
    %c0_i32 = arith.constant 0 : i32
    %0 = arith.cmpi eq, %arg2, %c0_i32 : i32
    %1 = arith.extui %0 : i1 to i32
    %c0_i32_0 = arith.constant 0 : i32
    %2 = arith.cmpi ne, %1, %c0_i32_0 : i32
    scf.if %2 {
      %cst_9 = arith.constant 0.000000e+00 : f32
      %11 = vector.broadcast %cst_9 : f32 to vector<8x128xf32>
      %c0_10 = arith.constant 0 : index
      %c0_11 = arith.constant 0 : index
      %12 = vector.load %arg5[%c0_10, %c0_11] : memref<8x128xf32, #tpu.memory_space<vmem>>, vector<8x128xf32>
      tpu.vector_store %arg5[%c0_10, %c0_11], %11 {strides = array<i32>} : memref<8x128xf32, #tpu.memory_space<vmem>>, vector<8x128xf32>,
    } else {
    }
    %c0 = arith.constant 0 : index
    %c0_1 = arith.constant 0 : index
    %c0_2 = arith.constant 0 : index
    %3 = vector.load %arg3[%c0, %c0_1, %c0_2] : memref<2x8x128xf32, #tpu.memory_space<vmem>>, vector<2x8x128xf32>
    %c0_3 = arith.constant 0 : index
    %c0_4 = arith.constant 0 : index
    %4 = vector.load %arg5[%c0_3, %c0_4] : memref<8x128xf32, #tpu.memory_space<vmem>>, vector<8x128xf32>
    %cst = arith.constant dense<0.000000e+00> : vector<8x128xf32>
    %5 = vector.multi_reduction <add>, %3, %cst [0] : vector<2x8x128xf32> to vector<8x128xf32>
    %6 = arith.addf %4, %5 : vector<8x128xf32>
    %c0_5 = arith.constant 0 : index
    %c0_6 = arith.constant 0 : index
    %7 = vector.load %arg5[%c0_5, %c0_6] : memref<8x128xf32, #tpu.memory_space<vmem>>, vector<8x128xf32>
    tpu.vector_store %arg5[%c0_5, %c0_6], %6 {strides = array<i32>} : memref<8x128xf32, #tpu.memory_space<vmem>>, vector<8x128xf32>,
    %c0_i32_7 = arith.constant 0 : i32
    %8 = arith.cmpi eq, %arg2, %c0_i32_7 : i32
    %9 = arith.extui %8 : i1 to i32
    %c0_i32_8 = arith.constant 0 : i32
    %10 = arith.cmpi ne, %9, %c0_i32_8 : i32
    scf.if %10 {
      %c0_9 = arith.constant 0 : index
      %c0_10 = arith.constant 0 : index
      %11 = vector.load %arg5[%c0_9, %c0_10] : memref<8x128xf32, #tpu.memory_space<vmem>>, vector<8x128xf32>
      %c0_11 = arith.constant 0 : index
      %c0_12 = arith.constant 0 : index
      %12 = vector.load %arg4[%c0_11, %c0_12] : memref<8x128xf32, #tpu.memory_space<vmem>>, vector<8x128xf32>
      tpu.vector_store %arg4[%c0_11, %c0_12], %11 {strides = array<i32>} : memref<8x128xf32, #tpu.memory_space<vmem>>, vector<8x128xf32>,
    } else {
    }
    return
  }
  func.func @transform_0(%arg0: i32, %arg1: i32, %arg2: i32) -> (i32, i32, i32) {
    %c0_i32 = arith.constant 0 : i32
    return %arg2, %arg0, %arg1 : i32, i32, i32
  }
  func.func @transform_1(%arg0: i32, %arg1: i32, %arg2: i32) -> (i32, i32) {
    %c0_i32 = arith.constant 0 : i32
    return %arg0, %arg1 : i32, i32
  }
}

</mosaic_0001>

<llo_original>
// kernel: _sum_dim0.1
$region0: #{_sum_dim0.1}
  #allocation0 [shape = 'u32[]', space=smem, size = 0x4, offset = 0x4, fixed_abs, tag = 'smem constant byte address 0x4 - core index']
  #allocation1 [shape = 'u32[72,128]{1,0:T(1,128)}', space=vmem, size = 0x9000, scoped, tag = 'internal scratch']
  #allocation2 [shape = 'f32[8,128]{1,0:T(8,128)}', space=vmem, size = 0x1000, scoped, tag = 'scratch operand']
  %s0 = inlined_call_operand.hbm [shape: f32[2,16,128], index: 0, kind: input, shape index: {}]
  %s1 = inlined_call_operand.hbm [shape: f32[16,128], index: 1, kind: output, shape index: {}]
  %s2 = sld [smem:[#allocation0]]
  $region49: #{_sum_dim0.1} parent=0
    _
  %s4 = ssub.s32 1, %s2
  %s5 = scalar_select 0, %s4, %s2
  $region1: #{_sum_dim0.1} parent=0
    #allocation3 [shape = 'u8[16384]{0}', space=vmem, size = 0x4000, scoped, tag = 'input window, operand 0']
    #allocation4 [shape = 's32[2]{0}', space=sflag, size = 0x8, scoped, tag = 'scoped memory for _sum_dim0.1']
    #allocation5 [shape = 's32[2]{0}', space=sflag, size = 0x8, scoped, tag = 'scoped memory for _sum_dim0.1']
    #allocation6 [shape = 'u8[8192]{0}', space=vmem, size = 0x2000, scoped, tag = 'output window, operand 0']
    %6 = vsyncpa [#allocation4], 0
    %s7 = scalar_lea.sflag [#allocation4], 1
    %8 = vsyncpa %s7, 0
    %9 = vsyncpa [#allocation5], 0
    %s10 = scalar_lea.sflag [#allocation5], 1
    %11 = vsyncpa %s10, 0
    loop: start=0, step=1, limit=4
    $region2: #{_sum_dim0.1} parent=1 // loop_pre_header
      _
    $region3: #{_sum_dim0.1} parent=1 // loop_header
      %s13 = sphi 0, %s17
      %p14 = scmp.ge.s32.totalorder %s13, 4
      %s20 = sphi 0, %s39
      %s21 = sphi 0, %s35
      %s22 = sphi 0, %s31
      %s23 = sphi 0, %s20
      %s24 = sphi 0, %s21
      %s25 = sphi 0, %s22
      %s26 = sphi 0, %s23
      %s27 = sphi 0, %s24
      %s28 = sphi 0, %s25
      %s46 = sphi 0, %s48
      %s49 = sphi 0, %s46
      %s50 = sphi 0, %s49
      %s66 = sphi 0, %s50
      %s74 = sphi 0, %s76
      %s77 = sphi 0, %s74
      %s78 = sphi 0, %s77
      %s94 = sphi 0, %s78
    $region4: #{_sum_dim0.1} parent=1 // loop_header_branch
      %16 = sbr.rel (%p14) target = $region8
    $region5: #{_sum_dim0.1} parent=1 // loop_body
      %s18 = ssub.s32 %s13, 1
      %s19 = ssub.s32 %s13, 2
      %s29 = sadd.s32 1, %s22
      %p30 = scmp.ge.s32.totalorder %s29, 1
      %s31 = scalar_select %p30, 0, %s29
      %s32 = sadd.s32 1, %s21
      %s33 = scalar_select %p30, %s32, %s21
      %p34 = scmp.ge.s32.totalorder %s33, 1
      %s35 = scalar_select %p34, 0, %s33
      %s36 = sadd.s32 1, %s20
      %s37 = scalar_select %p34, %s36, %s20
      %p38 = scmp.ge.s32.totalorder %s37, 2
      %s39 = scalar_select %p38, 0, %s37
      %s40 = ssub.s32 %s22, %s31
      %s41 = ssub.s32 %s20, %s39
      %s42 = sor.u32 %s40, %s41
      %s43 = ssub.s32 %s21, %s35
      %s44 = sor.u32 %s42, %s43
      %p45 = scmp.eq.s32.totalorder %s44, 0
      %s47 = sadd.s32 %s46, 1
      %s48 = scalar_select %p45, %s46, %s47
      %p51 = pneg %p45
      %p52 = scmp.eq.s32.totalorder %s13, 1
      %p53 = por %p51, %p52
      %p54 = scmp.ne.s32.totalorder %s46, %s49
      %p55 = scmp.eq.s32.totalorder %s13, 0
      %p56 = por %p54, %p55
      %p57 = scmp.ne.s32.totalorder %s46, %s49
      %p58 = scmp.eq.s32.totalorder %s18, 1
      %p59 = por %p57, %p58
      %p60 = scmp.ne.s32.totalorder %s49, %s50
      %p61 = scmp.eq.s32.totalorder %s18, 0
      %p62 = por %p60, %p61
      %p63 = scmp.ne.s32.totalorder %s49, %s50
      %p64 = scmp.eq.s32.totalorder %s19, 1
      %p65 = por %p63, %p64
      %p67 = scmp.ne.s32.totalorder %s50, %s66
      %p68 = scmp.eq.s32.totalorder %s19, 0
      %p69 = por %p67, %p68
      %s70 = ssub.s32 %s20, %s39
      %s71 = ssub.s32 %s21, %s35
      %s72 = sor.u32 %s70, %s71
      %p73 = scmp.eq.s32.totalorder %s72, 0
      %s75 = sadd.s32 %s74, 1
      %s76 = scalar_select %p73, %s74, %s75
      %p79 = pneg %p73
      %p80 = scmp.eq.s32.totalorder %s13, 1
      %p81 = por %p79, %p80
      %p82 = scmp.ne.s32.totalorder %s74, %s77
      %p83 = scmp.eq.s32.totalorder %s13, 0
      %p84 = por %p82, %p83
      %p85 = scmp.ne.s32.totalorder %s74, %s77
      %p86 = scmp.eq.s32.totalorder %s18, 1
      %p87 = por %p85, %p86
      %p88 = scmp.ne.s32.totalorder %s77, %s78
      %p89 = scmp.eq.s32.totalorder %s18, 0
      %p90 = por %p88, %p89
      %p91 = scmp.ne.s32.totalorder %s77, %s78
      %p92 = scmp.eq.s32.totalorder %s19, 1
      %p93 = por %p91, %p92
      %p95 = scmp.ne.s32.totalorder %s78, %s94
      %p96 = scmp.eq.s32.totalorder %s19, 0
      %p97 = por %p95, %p96
      %p98 = scmp.le.s32.totalorder 1, %s13
      %p99 = scmp.lt.s32.totalorder %s13, 3
      %p100 = pnand %p98, %p99
      %p101 = pneg %p100
      // Predicated region
      $region9: #{_sum_dim0.1} parent=5 // pred_check
        _
      $region10: #{_sum_dim0.1} parent=5 // pred_check_branch
        %103 = sbr.rel (%p100) target = $region12
      $region11: #{_sum_dim0.1} parent=5 // pred_region
        %s104 = ssub.s32 %s13, 1
      $region12: #{_sum_dim0.1} parent=5 // pred_fallthru
        _
      %p105 = scmp.lt.s32.totalorder %s13, 2
      // Predicated region
      $region13: #{_sum_dim0.1} parent=5 // pred_check
        %p106 = pneg %p105
      $region14: #{_sum_dim0.1} parent=5 // pred_check_branch
        %108 = sbr.rel (%p106) target = $region16
      $region15: #{_sum_dim0.1} parent=5 // pred_region
        // Predicated region
        $region17: #{_sum_dim0.1} parent=15 // pred_check
          %p109 = pneg %p56
        $region18: #{_sum_dim0.1} parent=15 // pred_check_branch
          %111 = sbr.rel (%p109) target = $region20
        $region19: #{_sum_dim0.1} parent=15 // pred_region
          %s112 = sand.u32 %s46, 1
          %s113 = scalar_lea.sflag [#allocation4], %s112
          %s114 = sand.u32 %s46, 1
          %s115 = smul.addr %s114, 16
          %s116 = scalar_lea.vmem [#allocation3], %s115
          %s117 = smul.u32 2, %s22
          %119 = vsyncadd %s113, 0
          %s120 = sadd.s32 %s21, %s20
          %s121 = smul.addr %s117, 2
          %s122 = sadd.s32 %s120, %s121
          %s123 = smul.addr %s122, 8
          %s124 = scalar_lea.hbm %s0, %s123
          %s125 = sshll.u32 %s124, 4
          %s126 = int_to_ptr.hbm [resolvable:$true] %s125
          %s127 = sshll.u32 %s116, 4
          %s128 = int_to_ptr.vmem [resolvable:$true] %s127
          %133 = dma.hbm_to_vmem [thread:$0]  %s126, 256, %s128, %s113, 256, 128, 8
        $region20: #{_sum_dim0.1} parent=15 // pred_fallthru
          _
      $region16: #{_sum_dim0.1} parent=5 // pred_fallthru
        _
      %p134 = scmp.le.s32.totalorder 1, %s13
      %p135 = scmp.lt.s32.totalorder %s13, 3
      %p136 = pnand %p134, %p135
      %p137 = pneg %p136
      // Predicated region
      $region21: #{_sum_dim0.1} parent=5 // pred_check
        _
      $region22: #{_sum_dim0.1} parent=5 // pred_check_branch
        %139 = sbr.rel (%p136) target = $region24
      $region23: #{_sum_dim0.1} parent=5 // pred_region
        %s140 = ssub.s32 %s13, 1
        %s141 = sand.u32 %s49, 1
        %s142 = scalar_lea.sflag [#allocation4], %s141
        %s143 = sand.u32 %s49, 1
        %s144 = smul.addr %s143, 16
        %s145 = scalar_lea.vmem [#allocation3], %s144
        // Predicated region
        $region25: #{_sum_dim0.1} parent=23 // pred_check
          %p146 = pneg %p62
        $region26: #{_sum_dim0.1} parent=23 // pred_check_branch
          %148 = sbr.rel (%p146) target = $region28
        $region27: #{_sum_dim0.1} parent=23 // pred_region
          %150 = dma.done %s142, 256
        $region28: #{_sum_dim0.1} parent=23 // pred_fallthru
          _
        %s151 = sand.u32 %s49, 1
        %s152 = scalar_lea.sflag [#allocation4], %s151
        %s153 = sand.u32 %s49, 1
        %s154 = smul.addr %s153, 16
        %s155 = scalar_lea.vmem [#allocation3], %s154
        %p156 = pneg %p62
        %p157 = pneg %p59
        %p158 = pneg %p90
        %p159 = pneg %p87
        %s160 = sand.u32 %s77, 1
        %s161 = scalar_lea.sflag [#allocation5], %s160
        %s162 = sand.u32 %s77, 1
        %s163 = smul.addr %s162, 8
        %s164 = scalar_lea.vmem [#allocation6], %s163
        %s165 = smul.u32 2, %s25
        %p166 = scmp.eq.s32.totalorder %s25, 0
        // Predicated region
        $region29: #{_sum_dim0.1} parent=23 // pred_check
          %p167 = pneg %p166
        $region30: #{_sum_dim0.1} parent=23 // pred_check_branch
          %169 = sbr.rel (%p167) target = $region32
        $region31: #{_sum_dim0.1} parent=23 // pred_region
          %170 = vst [vmem:[#allocation2] sm:$0xff] 0.0
        $region32: #{_sum_dim0.1} parent=23 // pred_fallthru
          _
        %v171 = vld [vmem:[%s145] sm:$0xff]
        %v172 = vld [vmem:[%s145 + $0x8] sm:$0xff]
        %v173 = vld [vmem:[#allocation2] sm:$0xff]
        %v174 = vadd.f32 %v171, %v172
        %v175 = vadd.f32 %v173, %v174
        %176 = vst [vmem:[#allocation2] sm:$0xff] %v175
        // Predicated region
        $region33: #{_sum_dim0.1} parent=23 // pred_check
          %p177 = pneg %p166
        $region34: #{_sum_dim0.1} parent=23 // pred_check_branch
          %179 = sbr.rel (%p177) target = $region36
        $region35: #{_sum_dim0.1} parent=23 // pred_region
          %v180 = vld [vmem:[#allocation2] sm:$0xff]
          %181 = vst [vmem:[%s164] sm:$0xff] %v180
        $region36: #{_sum_dim0.1} parent=23 // pred_fallthru
          _
        %s182 = sand.u32 %s77, 1
        %s183 = scalar_lea.sflag [#allocation5], %s182
        %s184 = sand.u32 %s77, 1
        %s185 = smul.addr %s184, 8
        %s186 = scalar_lea.vmem [#allocation6], %s185
        // Predicated region
        $region37: #{_sum_dim0.1} parent=23 // pred_check
          %p187 = pneg %p87
        $region38: #{_sum_dim0.1} parent=23 // pred_check_branch
          %189 = sbr.rel (%p187) target = $region40
        $region39: #{_sum_dim0.1} parent=23 // pred_region
          %191 = vsyncadd %s183, 0
          %s192 = sadd.s32 %s24, %s23
          %s193 = smul.addr %s192, 8
          %s194 = scalar_lea.hbm %s1, %s193
          %s196 = sshll.u32 %s186, 4
          %s197 = int_to_ptr.vmem [resolvable:$true] %s196
          %s198 = sshll.u32 %s194, 4
          %s199 = int_to_ptr.hbm [resolvable:$true] %s198
          %201 = dma.vmem_to_hbm [thread:$0]  %s197, 128, %s199, %s183
        $region40: #{_sum_dim0.1} parent=23 // pred_fallthru
          _
      $region24: #{_sum_dim0.1} parent=5 // pred_fallthru
        _
      %p202 = scmp.le.s32.totalorder 2, %s13
      // Predicated region
      $region41: #{_sum_dim0.1} parent=5 // pred_check
        %p203 = pneg %p202
      $region42: #{_sum_dim0.1} parent=5 // pred_check_branch
        %205 = sbr.rel (%p203) target = $region44
      $region43: #{_sum_dim0.1} parent=5 // pred_region
        %s206 = ssub.s32 %s13, 2
        // Predicated region
        $region45: #{_sum_dim0.1} parent=43 // pred_check
          %p207 = pneg %p93
        $region46: #{_sum_dim0.1} parent=43 // pred_check_branch
          %209 = sbr.rel (%p207) target = $region48
        $region47: #{_sum_dim0.1} parent=43 // pred_region
          %s210 = sand.u32 %s78, 1
          %s211 = scalar_lea.sflag [#allocation5], %s210
          %s212 = sand.u32 %s78, 1
          %s213 = smul.addr %s212, 8
          %s214 = scalar_lea.vmem [#allocation6], %s213
          %216 = dma.done %s211, 128
        $region48: #{_sum_dim0.1} parent=43 // pred_fallthru
          _
      $region44: #{_sum_dim0.1} parent=5 // pred_fallthru
        _
    $region6: #{_sum_dim0.1} parent=1 // loop_footer
      %s17 = sadd.s32 1, %s13
    $region7: #{_sum_dim0.1} parent=1 // loop_footer_branch
      %12 = sbr.rel target = $region3
    $region8: #{_sum_dim0.1} parent=1 // loop_exit
      _
    %217 = vsyncpa [#allocation4], 1
    %s218 = scalar_lea.sflag [#allocation4], 1
    %219 = vsyncpa %s218, 1
    %220 = vsyncpa [#allocation5], 1
    %s221 = scalar_lea.sflag [#allocation5], 1
    %222 = vsyncpa %s221, 1

</llo_original>
